<compile_context>
chip_gen: v6e
topology: v6e:2x2x1
jax: 0.10.0
libtpu: 0.0.40
codegen_flags: <defaults>
</compile_context>

<pallas_src>
import functools

import jax
import jax.numpy as jnp
from jax.experimental import pallas as pl
from jax.experimental.pallas import tpu as pltpu


# Scoped-VMEM cap: above the 16/32 MiB defaults, with headroom under v7x's
# 64 MiB physical VMEM.
_VMEM_LIMIT_BYTES = 48 * 1024 * 1024


def _pick_tile(n, candidates=(256, 128, 64, 32, 16, 8)):
    """Largest tile edge that divides n (256 targets v6e/v7x MXU, 128 v5e);
    falls back to the full extent (always a legal block)."""
    for c in candidates:
        if n % c == 0:
            return c
    return n


# --------------------------- kernel 1: QKV proj -----------------------------

def _qkv_proj_kernel(x_ref, wqkv_ref, q_ref, k_ref, v_ref, *, heads, head_dim):
    """One grid step == one (batch, token-tile).

    x_ref    : (1, tn, dim)
    wqkv_ref : (dim, 3*dim)   pre-transposed, q-columns pre-scaled
    q_ref    : (1, heads, tn, d)
    k_ref    : (1, heads, tn, d)
    v_ref    : (1, heads, tn, d)
    """
    dim = x_ref.shape[2]
    d = head_dim
    x = x_ref[0]                                                   # (tn, dim)
    qkv = jnp.dot(x, wqkv_ref[...],
                  preferred_element_type=jnp.float32)              # (tn, 3*dim)
    # Last-axis layout is '(qkv h d)'.  Static slice-stores re-layout to the
    # per-head (heads, tn, d) blocks the attention kernel consumes.
    for h in range(heads):
        q_ref[0, h] = qkv[:, 0 * dim + h * d:0 * dim + (h + 1) * d].astype(q_ref.dtype)
        k_ref[0, h] = qkv[:, 1 * dim + h * d:1 * dim + (h + 1) * d].astype(k_ref.dtype)
        v_ref[0, h] = qkv[:, 2 * dim + h * d:2 * dim + (h + 1) * d].astype(v_ref.dtype)


# --------------------- kernel 2: attention + out proj -----------------------

def _attn_kernel(q_ref, k_ref, v_ref, wo_ref, bo_ref, *refs,
                 with_attn, mxu_dtype):
    """One grid step == one (batch, q-tile, head).  heads axis is the
    innermost 'arbitrary' reduction axis (output accumulates over it).

    q_ref  : (1, 1, tq, d)   scale already folded in
    k_ref  : (1, 1, n,  d)
    v_ref  : (1, 1, n,  d)
    wo_ref : (1, d, dim)     this head's rows of W_out
    bo_ref : (1, dim)
    out_ref: (1, tq, dim)    lane-dense projected output (same block for all h)
    attn_ref (optional): (1, 1, tq, n)
    acc_ref: (tq, dim) f32 VMEM scratch
    """
    if with_attn:
        out_ref, attn_ref, acc_ref = refs
    else:
        out_ref, acc_ref = refs
        attn_ref = None

    h = pl.program_id(2)

    @pl.when(h == 0)
    def _init():
        acc_ref[...] = jnp.zeros_like(acc_ref)

    q = q_ref[0, 0]                                                # (tq, d)
    k = k_ref[0, 0]                                                # (n,  d)
    v = v_ref[0, 0]                                                # (n,  d)

    # q @ k^T without an explicit in-kernel transpose.
    s = jax.lax.dot_general(q, k, (((1,), (1,)), ((), ())),
                            preferred_element_type=jnp.float32)    # (tq, n)
    m = jnp.max(s, axis=-1, keepdims=True)
    e = jnp.exp(s - m)
    # EUP reciprocal instead of a VALU divide (approx=False keeps the
    # returned attention within 1e-4 of the reference).
    p = e * pl.reciprocal(jnp.sum(e, axis=-1, keepdims=True))      # (tq, n)

    if with_attn:
        attn_ref[0, 0] = p.astype(attn_ref.dtype)

    ctx = jnp.dot(p.astype(mxu_dtype), v,
                  preferred_element_type=jnp.float32)              # (tq, d)

    # Head-merge fused with the output projection:
    #   concat_h(ctx_h) @ W_out == sum_h ctx_h @ W_out[h*d:(h+1)*d, :]
    acc_ref[...] += jnp.dot(ctx.astype(mxu_dtype), wo_ref[0],
                            preferred_element_type=jnp.float32)    # (tq, dim)

    @pl.when(h == pl.num_programs(2) - 1)
    def _finalize():
        out_ref[0] = (acc_ref[...] + bo_ref[...].astype(jnp.float32)
                      ).astype(out_ref.dtype)


# --------------------------------- wrapper ----------------------------------

def attention_forward(x, w_qkv, w_out, b_out, heads, *,
                      return_attn=True, attn_dtype=jnp.float32):
    """Reproduces Attention.forward(x, mask=None).

    Returns (out, attn) when return_attn=True (matching the module), else out.
    attn_dtype=jnp.bfloat16 halves the n^2 attention writeback when exact f32
    probabilities are not needed.
    """
    b, n, dim = x.shape
    assert dim % heads == 0
    d = dim // heads
    scale = dim ** (-0.5)   # matches the PyTorch module: full dim, not head_dim

    # Fold the softmax scale into the q-columns of W_qkv (free at runtime).
    col_scale = jnp.concatenate([
        jnp.full((dim,), scale, dtype=w_qkv.dtype),
        jnp.ones((2 * dim,), dtype=w_qkv.dtype),
    ])
    w_qkv_scaled = w_qkv * col_scale[None, :]

    # bf16 MXU operands when the model runs in bf16; exact f32 otherwise.
    mxu_dtype = jnp.bfloat16 if x.dtype == jnp.bfloat16 else jnp.float32

    # ---- pass 1: QKV projection, per-head layout -------------------------
    # NOTE: W_qkv's index_map is constant, so it is DMA'd only once; at very
    # large dim it could additionally be single-buffered
    # (pipeline_mode=pl.Buffered(1)) to halve its VMEM footprint.
    tn = _pick_tile(n)
    qkv_shape = jax.ShapeDtypeStruct((b, heads, n, d), x.dtype)
    q, k, v = pl.pallas_call(
        functools.partial(_qkv_proj_kernel, heads=heads, head_dim=d),
        out_shape=(qkv_shape, qkv_shape, qkv_shape),
        grid=(b, n // tn),
        in_specs=[
            pl.BlockSpec((1, tn, dim), lambda bi, ti: (bi, ti, 0)),     # x
            pl.BlockSpec((dim, 3 * dim), lambda bi, ti: (0, 0)),        # w_qkv
        ],
        out_specs=tuple(
            pl.BlockSpec((1, heads, tn, d), lambda bi, ti: (bi, 0, ti, 0))
            for _ in range(3)),
        compiler_params=pltpu.CompilerParams(
            dimension_semantics=("parallel", "parallel"),
            vmem_limit_bytes=_VMEM_LIMIT_BYTES,
        ),
    )(x, w_qkv_scaled)

    # ---- pass 2: attention + head-merge + output projection ---------------
    tq = _pick_tile(n)
    w_out_h = w_out.reshape(heads, d, dim)    # per-head rows of W_out
    b_out2 = b_out.reshape(1, dim)

    out_shapes = [jax.ShapeDtypeStruct((b, n, dim), x.dtype)]
    out_specs = [pl.BlockSpec((1, tq, dim), lambda bi, qi, h: (bi, qi, 0))]
    if return_attn:
        out_shapes.append(jax.ShapeDtypeStruct((b, heads, n, n), attn_dtype))
        out_specs.append(
            pl.BlockSpec((1, 1, tq, n), lambda bi, qi, h: (bi, h, qi, 0)))

    itemsize = x.dtype.itemsize
    flops = 4 * b * heads * n * n * d + 2 * b * n * dim * dim
    bytes_accessed = (4 * b * n * dim * itemsize           # q,k,v in + out
                      + dim * dim * w_out.dtype.itemsize
                      + dim * b_out.dtype.itemsize)
    if return_attn:
        bytes_accessed += b * heads * n * n * jnp.dtype(attn_dtype).itemsize
    cost = pl.CostEstimate(flops=flops,
                           transcendentals=b * heads * n * n,
                           bytes_accessed=bytes_accessed)

    results = pl.pallas_call(
        functools.partial(_attn_kernel, with_attn=return_attn,
                          mxu_dtype=mxu_dtype),
        out_shape=tuple(out_shapes),
        grid=(b, n // tq, heads),
        in_specs=[
            pl.BlockSpec((1, 1, tq, d), lambda bi, qi, h: (bi, h, qi, 0)),  # q
            pl.BlockSpec((1, 1, n, d), lambda bi, qi, h: (bi, h, 0, 0)),    # k
            pl.BlockSpec((1, 1, n, d), lambda bi, qi, h: (bi, h, 0, 0)),    # v
            pl.BlockSpec((1, d, dim), lambda bi, qi, h: (h, 0, 0)),         # w_out[h]
            pl.BlockSpec((1, dim), lambda bi, qi, h: (0, 0)),               # b_out
        ],
        out_specs=tuple(out_specs),
        scratch_shapes=[pltpu.VMEM((tq, dim), jnp.float32)],
        compiler_params=pltpu.CompilerParams(
            dimension_semantics=("parallel", "parallel", "arbitrary"),
            vmem_limit_bytes=_VMEM_LIMIT_BYTES,
        ),
        cost_estimate=cost,
    )(q, k, v, w_out_h, b_out2)

    if return_attn:
        out, attn = results
        return out, attn
    (out,) = results
    return out


# ------------------------------ pure-JAX ref --------------------------------

def reference_forward(x, w_qkv, w_out, b_out, heads):
    b, n, dim = x.shape
    d = dim // heads
    qkv = x @ w_qkv
    qkv = qkv.reshape(b, n, 3, heads, d).transpose(2, 0, 3, 1, 4)
    q, k, v = qkv[0], qkv[1], qkv[2]
    dots = jnp.einsum('bhid,bhjd->bhij', q, k) * dim ** (-0.5)
    attn = jax.nn.softmax(dots, axis=-1)
    out = jnp.einsum('bhij,bhjd->bhid', attn, v)
    out = out.transpose(0, 2, 1, 3).reshape(b, n, dim)
    out = out @ w_out + b_out
    return out, attn


# ---------------------------------- main ------------------------------------

if __name__ == "__main__":
    b, n, dim, heads = 2, 8, 32, 8

    key = jax.random.PRNGKey(0)
    kx, kq, ko, kb = jax.random.split(key, 4)
    x = jax.random.normal(kx, (b, n, dim), jnp.float32)
    # Deterministic synthetic parameters (shapes from nn.Linear in __init__),
    # stored pre-transposed so y = x @ W.
    w_qkv = jax.random.normal(kq, (dim, 3 * dim), jnp.float32) * (dim ** -0.5)
    w_out = jax.random.normal(ko, (dim, dim), jnp.float32) * (dim ** -0.5)
    b_out = jax.random.normal(kb, (dim,), jnp.float32) * 0.01

    out, attn = attention_forward(x, w_qkv, w_out, b_out, heads,
                                  return_attn=True, attn_dtype=jnp.float32)
    jax.block_until_ready((out, attn))

    ref_out, ref_attn = reference_forward(x, w_qkv, w_out, b_out, heads)
    assert out.shape == (b, n, dim) and attn.shape == (b, heads, n, n)
    assert jnp.allclose(out, ref_out, rtol=1e-4, atol=1e-4)
    assert jnp.allclose(attn, ref_attn, rtol=1e-4, atol=1e-4)

    print("KERNEL_OK")
</pallas_src>

<mosaic_0001>
module attributes {stable_mosaic.version = 11 : i64} {
  func.func @_qkv_proj_kernel(%arg0: i32, %arg1: i32, %arg2: memref<1x8x32xf32, #tpu.memory_space<vmem>>, %arg3: memref<32x96xf32, #tpu.memory_space<vmem>>, %arg4: memref<1x8x8x4xf32, #tpu.memory_space<vmem>>, %arg5: memref<1x8x8x4xf32, #tpu.memory_space<vmem>>, %arg6: memref<1x8x8x4xf32, #tpu.memory_space<vmem>>) attributes {dimension_semantics = [#tpu.dimension_semantics<parallel>, #tpu.dimension_semantics<parallel>], iteration_bounds = array<i64: 2, 1>, scalar_prefetch = 0 : i64, scratch_operands = 0 : i64, tpu.core_type = #tpu.core_type<tc>, window_params = [{transform_indices = @transform_0, window_bounds = array<i64: 1, 8, 32>}, {pipeline_mode = #tpu.pipeline_mode<synchronous>, transform_indices = @transform_1, window_bounds = array<i64: 32, 96>}, {transform_indices = @transform_2, window_bounds = array<i64: 1, 8, 8, 4>}, {transform_indices = @transform_3, window_bounds = array<i64: 1, 8, 8, 4>}, {transform_indices = @transform_4, window_bounds = array<i64: 1, 8, 8, 4>}]} {
    %c0 = arith.constant 0 : index
    %c0_0 = arith.constant 0 : index
    %c0_1 = arith.constant 0 : index
    %0 = vector.load %arg2[%c0, %c0_0, %c0_1] : memref<1x8x32xf32, #tpu.memory_space<vmem>>, vector<1x8x32xf32>
    %1 = vector.shape_cast %0 : vector<1x8x32xf32> to vector<8x32xf32>
    %c0_2 = arith.constant 0 : index
    %c0_3 = arith.constant 0 : index
    %2 = vector.load %arg3[%c0_2, %c0_3] : memref<32x96xf32, #tpu.memory_space<vmem>>, vector<32x96xf32>
    %cst = arith.constant dense<0.000000e+00> : vector<8x96xf32>
    %3 = tpu.matmul %1, %2, %cst {dimension_numbers = #tpu.dot_dimension_numbers<[1], [0], [0], [1], [0, 0, 1, 1], [], []>} : vector<8x32xf32>, vector<32x96xf32>, vector<8x96xf32> -> vector<8x96xf32>
    %4 = vector.extract_strided_slice %3 {offsets = [0, 0], sizes = [8, 4], strides = [1, 1]} : vector<8x96xf32> to vector<8x4xf32>
    %c0_4 = arith.constant 0 : index
    %c0_5 = arith.constant 0 : index
    %c0_6 = arith.constant 0 : index
    %c0_7 = arith.constant 0 : index
    %5 = vector.load %arg4[%c0_4, %c0_5, %c0_6, %c0_7] : memref<1x8x8x4xf32, #tpu.memory_space<vmem>>, vector<1x1x8x4xf32>
    %6 = vector.shape_cast %5 : vector<1x1x8x4xf32> to vector<8x4xf32>
    %7 = vector.shape_cast %4 : vector<8x4xf32> to vector<1x1x8x4xf32>
    tpu.vector_store %arg4[%c0_4, %c0_5, %c0_6, %c0_7], %7 {strides = array<i32>} : memref<1x8x8x4xf32, #tpu.memory_space<vmem>>, vector<1x1x8x4xf32>,
    %8 = vector.extract_strided_slice %3 {offsets = [0, 32], sizes = [8, 4], strides = [1, 1]} : vector<8x96xf32> to vector<8x4xf32>
    %c0_8 = arith.constant 0 : index
    %c0_9 = arith.constant 0 : index
    %c0_10 = arith.constant 0 : index
    %c0_11 = arith.constant 0 : index
    %9 = vector.load %arg5[%c0_8, %c0_9, %c0_10, %c0_11] : memref<1x8x8x4xf32, #tpu.memory_space<vmem>>, vector<1x1x8x4xf32>
    %10 = vector.shape_cast %9 : vector<1x1x8x4xf32> to vector<8x4xf32>
    %11 = vector.shape_cast %8 : vector<8x4xf32> to vector<1x1x8x4xf32>
    tpu.vector_store %arg5[%c0_8, %c0_9, %c0_10, %c0_11], %11 {strides = array<i32>} : memref<1x8x8x4xf32, #tpu.memory_space<vmem>>, vector<1x1x8x4xf32>,
    %12 = vector.extract_strided_slice %3 {offsets = [0, 64], sizes = [8, 4], strides = [1, 1]} : vector<8x96xf32> to vector<8x4xf32>
    %c0_12 = arith.constant 0 : index
    %c0_13 = arith.constant 0 : index
    %c0_14 = arith.constant 0 : index
    %c0_15 = arith.constant 0 : index
    %13 = vector.load %arg6[%c0_12, %c0_13, %c0_14, %c0_15] : memref<1x8x8x4xf32, #tpu.memory_space<vmem>>, vector<1x1x8x4xf32>
    %14 = vector.shape_cast %13 : vector<1x1x8x4xf32> to vector<8x4xf32>
    %15 = vector.shape_cast %12 : vector<8x4xf32> to vector<1x1x8x4xf32>
    tpu.vector_store %arg6[%c0_12, %c0_13, %c0_14, %c0_15], %15 {strides = array<i32>} : memref<1x8x8x4xf32, #tpu.memory_space<vmem>>, vector<1x1x8x4xf32>,
    %16 = vector.extract_strided_slice %3 {offsets = [0, 4], sizes = [8, 4], strides = [1, 1]} : vector<8x96xf32> to vector<8x4xf32>
    %c0_16 = arith.constant 0 : index
    %c1 = arith.constant 1 : index
    %c0_17 = arith.constant 0 : index
    %c0_18 = arith.constant 0 : index
    %17 = vector.load %arg4[%c0_16, %c1, %c0_17, %c0_18] : memref<1x8x8x4xf32, #tpu.memory_space<vmem>>, vector<1x1x8x4xf32>
    %18 = vector.shape_cast %17 : vector<1x1x8x4xf32> to vector<8x4xf32>
    %19 = vector.shape_cast %16 : vector<8x4xf32> to vector<1x1x8x4xf32>
    tpu.vector_store %arg4[%c0_16, %c1, %c0_17, %c0_18], %19 {strides = array<i32>} : memref<1x8x8x4xf32, #tpu.memory_space<vmem>>, vector<1x1x8x4xf32>,
    %20 = vector.extract_strided_slice %3 {offsets = [0, 36], sizes = [8, 4], strides = [1, 1]} : vector<8x96xf32> to vector<8x4xf32>
    %c0_19 = arith.constant 0 : index
    %c1_20 = arith.constant 1 : index
    %c0_21 = arith.constant 0 : index
    %c0_22 = arith.constant 0 : index
    %21 = vector.load %arg5[%c0_19, %c1_20, %c0_21, %c0_22] : memref<1x8x8x4xf32, #tpu.memory_space<vmem>>, vector<1x1x8x4xf32>
    %22 = vector.shape_cast %21 : vector<1x1x8x4xf32> to vector<8x4xf32>
    %23 = vector.shape_cast %20 : vector<8x4xf32> to vector<1x1x8x4xf32>
    tpu.vector_store %arg5[%c0_19, %c1_20, %c0_21, %c0_22], %23 {strides = array<i32>} : memref<1x8x8x4xf32, #tpu.memory_space<vmem>>, vector<1x1x8x4xf32>,
    %24 = vector.extract_strided_slice %3 {offsets = [0, 68], sizes = [8, 4], strides = [1, 1]} : vector<8x96xf32> to vector<8x4xf32>
    %c0_23 = arith.constant 0 : index
    %c1_24 = arith.constant 1 : index
    %c0_25 = arith.constant 0 : index
    %c0_26 = arith.constant 0 : index
    %25 = vector.load %arg6[%c0_23, %c1_24, %c0_25, %c0_26] : memref<1x8x8x4xf32, #tpu.memory_space<vmem>>, vector<1x1x8x4xf32>
    %26 = vector.shape_cast %25 : vector<1x1x8x4xf32> to vector<8x4xf32>
    %27 = vector.shape_cast %24 : vector<8x4xf32> to vector<1x1x8x4xf32>
    tpu.vector_store %arg6[%c0_23, %c1_24, %c0_25, %c0_26], %27 {strides = array<i32>} : memref<1x8x8x4xf32, #tpu.memory_space<vmem>>, vector<1x1x8x4xf32>,
    %28 = vector.extract_strided_slice %3 {offsets = [0, 8], sizes = [8, 4], strides = [1, 1]} : vector<8x96xf32> to vector<8x4xf32>
    %c0_27 = arith.constant 0 : index
    %c2 = arith.constant 2 : index
    %c0_28 = arith.constant 0 : index
    %c0_29 = arith.constant 0 : index
    %29 = vector.load %arg4[%c0_27, %c2, %c0_28, %c0_29] : memref<1x8x8x4xf32, #tpu.memory_space<vmem>>, vector<1x1x8x4xf32>
    %30 = vector.shape_cast %29 : vector<1x1x8x4xf32> to vector<8x4xf32>
    %31 = vector.shape_cast %28 : vector<8x4xf32> to vector<1x1x8x4xf32>
    tpu.vector_store %arg4[%c0_27, %c2, %c0_28, %c0_29], %31 {strides = array<i32>} : memref<1x8x8x4xf32, #tpu.memory_space<vmem>>, vector<1x1x8x4xf32>,
    %32 = vector.extract_strided_slice %3 {offsets = [0, 40], sizes = [8, 4], strides = [1, 1]} : vector<8x96xf32> to vector<8x4xf32>
    %c0_30 = arith.constant 0 : index
    %c2_31 = arith.constant 2 : index
    %c0_32 = arith.constant 0 : index
    %c0_33 = arith.constant 0 : index
    %33 = vector.load %arg5[%c0_30, %c2_31, %c0_32, %c0_33] : memref<1x8x8x4xf32, #tpu.memory_space<vmem>>, vector<1x1x8x4xf32>
    %34 = vector.shape_cast %33 : vector<1x1x8x4xf32> to vector<8x4xf32>
    %35 = vector.shape_cast %32 : vector<8x4xf32> to vector<1x1x8x4xf32>
    tpu.vector_store %arg5[%c0_30, %c2_31, %c0_32, %c0_33], %35 {strides = array<i32>} : memref<1x8x8x4xf32, #tpu.memory_space<vmem>>, vector<1x1x8x4xf32>,
    %36 = vector.extract_strided_slice %3 {offsets = [0, 72], sizes = [8, 4], strides = [1, 1]} : vector<8x96xf32> to vector<8x4xf32>
    %c0_34 = arith.constant 0 : index
    %c2_35 = arith.constant 2 : index
    %c0_36 = arith.constant 0 : index
    %c0_37 = arith.constant 0 : index
    %37 = vector.load %arg6[%c0_34, %c2_35, %c0_36, %c0_37] : memref<1x8x8x4xf32, #tpu.memory_space<vmem>>, vector<1x1x8x4xf32>
    %38 = vector.shape_cast %37 : vector<1x1x8x4xf32> to vector<8x4xf32>
    %39 = vector.shape_cast %36 : vector<8x4xf32> to vector<1x1x8x4xf32>
    tpu.vector_store %arg6[%c0_34, %c2_35, %c0_36, %c0_37], %39 {strides = array<i32>} : memref<1x8x8x4xf32, #tpu.memory_space<vmem>>, vector<1x1x8x4xf32>,
    %40 = vector.extract_strided_slice %3 {offsets = [0, 12], sizes = [8, 4], strides = [1, 1]} : vector<8x96xf32> to vector<8x4xf32>
    %c0_38 = arith.constant 0 : index
    %c3 = arith.constant 3 : index
    %c0_39 = arith.constant 0 : index
    %c0_40 = arith.constant 0 : index
    %41 = vector.load %arg4[%c0_38, %c3, %c0_39, %c0_40] : memref<1x8x8x4xf32, #tpu.memory_space<vmem>>, vector<1x1x8x4xf32>
    %42 = vector.shape_cast %41 : vector<1x1x8x4xf32> to vector<8x4xf32>
    %43 = vector.shape_cast %40 : vector<8x4xf32> to vector<1x1x8x4xf32>
    tpu.vector_store %arg4[%c0_38, %c3, %c0_39, %c0_40], %43 {strides = array<i32>} : memref<1x8x8x4xf32, #tpu.memory_space<vmem>>, vector<1x1x8x4xf32>,
    %44 = vector.extract_strided_slice %3 {offsets = [0, 44], sizes = [8, 4], strides = [1, 1]} : vector<8x96xf32> to vector<8x4xf32>
    %c0_41 = arith.constant 0 : index
    %c3_42 = arith.constant 3 : index
    %c0_43 = arith.constant 0 : index
    %c0_44 = arith.constant 0 : index
    %45 = vector.load %arg5[%c0_41, %c3_42, %c0_43, %c0_44] : memref<1x8x8x4xf32, #tpu.memory_space<vmem>>, vector<1x1x8x4xf32>
    %46 = vector.shape_cast %45 : vector<1x1x8x4xf32> to vector<8x4xf32>
    %47 = vector.shape_cast %44 : vector<8x4xf32> to vector<1x1x8x4xf32>
    tpu.vector_store %arg5[%c0_41, %c3_42, %c0_43, %c0_44], %47 {strides = array<i32>} : memref<1x8x8x4xf32, #tpu.memory_space<vmem>>, vector<1x1x8x4xf32>,
    %48 = vector.extract_strided_slice %3 {offsets = [0, 76], sizes = [8, 4], strides = [1, 1]} : vector<8x96xf32> to vector<8x4xf32>
    %c0_45 = arith.constant 0 : index
    %c3_46 = arith.constant 3 : index
    %c0_47 = arith.constant 0 : index
    %c0_48 = arith.constant 0 : index
    %49 = vector.load %arg6[%c0_45, %c3_46, %c0_47, %c0_48] : memref<1x8x8x4xf32, #tpu.memory_space<vmem>>, vector<1x1x8x4xf32>
    %50 = vector.shape_cast %49 : vector<1x1x8x4xf32> to vector<8x4xf32>
    %51 = vector.shape_cast %48 : vector<8x4xf32> to vector<1x1x8x4xf32>
    tpu.vector_store %arg6[%c0_45, %c3_46, %c0_47, %c0_48], %51 {strides = array<i32>} : memref<1x8x8x4xf32, #tpu.memory_space<vmem>>, vector<1x1x8x4xf32>,
    %52 = vector.extract_strided_slice %3 {offsets = [0, 16], sizes = [8, 4], strides = [1, 1]} : vector<8x96xf32> to vector<8x4xf32>
    %c0_49 = arith.constant 0 : index
    %c4 = arith.constant 4 : index
    %c0_50 = arith.constant 0 : index
    %c0_51 = arith.constant 0 : index
    %53 = vector.load %arg4[%c0_49, %c4, %c0_50, %c0_51] : memref<1x8x8x4xf32, #tpu.memory_space<vmem>>, vector<1x1x8x4xf32>
    %54 = vector.shape_cast %53 : vector<1x1x8x4xf32> to vector<8x4xf32>
    %55 = vector.shape_cast %52 : vector<8x4xf32> to vector<1x1x8x4xf32>
    tpu.vector_store %arg4[%c0_49, %c4, %c0_50, %c0_51], %55 {strides = array<i32>} : memref<1x8x8x4xf32, #tpu.memory_space<vmem>>, vector<1x1x8x4xf32>,
    %56 = vector.extract_strided_slice %3 {offsets = [0, 48], sizes = [8, 4], strides = [1, 1]} : vector<8x96xf32> to vector<8x4xf32>
    %c0_52 = arith.constant 0 : index
    %c4_53 = arith.constant 4 : index
    %c0_54 = arith.constant 0 : index
    %c0_55 = arith.constant 0 : index
    %57 = vector.load %arg5[%c0_52, %c4_53, %c0_54, %c0_55] : memref<1x8x8x4xf32, #tpu.memory_space<vmem>>, vector<1x1x8x4xf32>
    %58 = vector.shape_cast %57 : vector<1x1x8x4xf32> to vector<8x4xf32>
    %59 = vector.shape_cast %56 : vector<8x4xf32> to vector<1x1x8x4xf32>
    tpu.vector_store %arg5[%c0_52, %c4_53, %c0_54, %c0_55], %59 {strides = array<i32>} : memref<1x8x8x4xf32, #tpu.memory_space<vmem>>, vector<1x1x8x4xf32>,
    %60 = vector.extract_strided_slice %3 {offsets = [0, 80], sizes = [8, 4], strides = [1, 1]} : vector<8x96xf32> to vector<8x4xf32>
    %c0_56 = arith.constant 0 : index
    %c4_57 = arith.constant 4 : index
    %c0_58 = arith.constant 0 : index
    %c0_59 = arith.constant 0 : index
    %61 = vector.load %arg6[%c0_56, %c4_57, %c0_58, %c0_59] : memref<1x8x8x4xf32, #tpu.memory_space<vmem>>, vector<1x1x8x4xf32>
    %62 = vector.shape_cast %61 : vector<1x1x8x4xf32> to vector<8x4xf32>
    %63 = vector.shape_cast %60 : vector<8x4xf32> to vector<1x1x8x4xf32>
    tpu.vector_store %arg6[%c0_56, %c4_57, %c0_58, %c0_59], %63 {strides = array<i32>} : memref<1x8x8x4xf32, #tpu.memory_space<vmem>>, vector<1x1x8x4xf32>,
    %64 = vector.extract_strided_slice %3 {offsets = [0, 20], sizes = [8, 4], strides = [1, 1]} : vector<8x96xf32> to vector<8x4xf32>
    %c0_60 = arith.constant 0 : index
    %c5 = arith.constant 5 : index
    %c0_61 = arith.constant 0 : index
    %c0_62 = arith.constant 0 : index
    %65 = vector.load %arg4[%c0_60, %c5, %c0_61, %c0_62] : memref<1x8x8x4xf32, #tpu.memory_space<vmem>>, vector<1x1x8x4xf32>
    %66 = vector.shape_cast %65 : vector<1x1x8x4xf32> to vector<8x4xf32>
    %67 = vector.shape_cast %64 : vector<8x4xf32> to vector<1x1x8x4xf32>
    tpu.vector_store %arg4[%c0_60, %c5, %c0_61, %c0_62], %67 {strides = array<i32>} : memref<1x8x8x4xf32, #tpu.memory_space<vmem>>, vector<1x1x8x4xf32>,
    %68 = vector.extract_strided_slice %3 {offsets = [0, 52], sizes = [8, 4], strides = [1, 1]} : vector<8x96xf32> to vector<8x4xf32>
    %c0_63 = arith.constant 0 : index
    %c5_64 = arith.constant 5 : index
    %c0_65 = arith.constant 0 : index
    %c0_66 = arith.constant 0 : index
    %69 = vector.load %arg5[%c0_63, %c5_64, %c0_65, %c0_66] : memref<1x8x8x4xf32, #tpu.memory_space<vmem>>, vector<1x1x8x4xf32>
    %70 = vector.shape_cast %69 : vector<1x1x8x4xf32> to vector<8x4xf32>
    %71 = vector.shape_cast %68 : vector<8x4xf32> to vector<1x1x8x4xf32>
    tpu.vector_store %arg5[%c0_63, %c5_64, %c0_65, %c0_66], %71 {strides = array<i32>} : memref<1x8x8x4xf32, #tpu.memory_space<vmem>>, vector<1x1x8x4xf32>,
    %72 = vector.extract_strided_slice %3 {offsets = [0, 84], sizes = [8, 4], strides = [1, 1]} : vector<8x96xf32> to vector<8x4xf32>
    %c0_67 = arith.constant 0 : index
    %c5_68 = arith.constant 5 : index
    %c0_69 = arith.constant 0 : index
    %c0_70 = arith.constant 0 : index
    %73 = vector.load %arg6[%c0_67, %c5_68, %c0_69, %c0_70] : memref<1x8x8x4xf32, #tpu.memory_space<vmem>>, vector<1x1x8x4xf32>
    %74 = vector.shape_cast %73 : vector<1x1x8x4xf32> to vector<8x4xf32>
    %75 = vector.shape_cast %72 : vector<8x4xf32> to vector<1x1x8x4xf32>
    tpu.vector_store %arg6[%c0_67, %c5_68, %c0_69, %c0_70], %75 {strides = array<i32>} : memref<1x8x8x4xf32, #tpu.memory_space<vmem>>, vector<1x1x8x4xf32>,
    %76 = vector.extract_strided_slice %3 {offsets = [0, 24], sizes = [8, 4], strides = [1, 1]} : vector<8x96xf32> to vector<8x4xf32>
    %c0_71 = arith.constant 0 : index
    %c6 = arith.constant 6 : index
    %c0_72 = arith.constant 0 : index
    %c0_73 = arith.constant 0 : index
    %77 = vector.load %arg4[%c0_71, %c6, %c0_72, %c0_73] : memref<1x8x8x4xf32, #tpu.memory_space<vmem>>, vector<1x1x8x4xf32>
    %78 = vector.shape_cast %77 : vector<1x1x8x4xf32> to vector<8x4xf32>
    %79 = vector.shape_cast %76 : vector<8x4xf32> to vector<1x1x8x4xf32>
    tpu.vector_store %arg4[%c0_71, %c6, %c0_72, %c0_73], %79 {strides = array<i32>} : memref<1x8x8x4xf32, #tpu.memory_space<vmem>>, vector<1x1x8x4xf32>,
    %80 = vector.extract_strided_slice %3 {offsets = [0, 56], sizes = [8, 4], strides = [1, 1]} : vector<8x96xf32> to vector<8x4xf32>
    %c0_74 = arith.constant 0 : index
    %c6_75 = arith.constant 6 : index
    %c0_76 = arith.constant 0 : index
    %c0_77 = arith.constant 0 : index
    %81 = vector.load %arg5[%c0_74, %c6_75, %c0_76, %c0_77] : memref<1x8x8x4xf32, #tpu.memory_space<vmem>>, vector<1x1x8x4xf32>
    %82 = vector.shape_cast %81 : vector<1x1x8x4xf32> to vector<8x4xf32>
    %83 = vector.shape_cast %80 : vector<8x4xf32> to vector<1x1x8x4xf32>
    tpu.vector_store %arg5[%c0_74, %c6_75, %c0_76, %c0_77], %83 {strides = array<i32>} : memref<1x8x8x4xf32, #tpu.memory_space<vmem>>, vector<1x1x8x4xf32>,
    %84 = vector.extract_strided_slice %3 {offsets = [0, 88], sizes = [8, 4], strides = [1, 1]} : vector<8x96xf32> to vector<8x4xf32>
    %c0_78 = arith.constant 0 : index
    %c6_79 = arith.constant 6 : index
    %c0_80 = arith.constant 0 : index
    %c0_81 = arith.constant 0 : index
    %85 = vector.load %arg6[%c0_78, %c6_79, %c0_80, %c0_81] : memref<1x8x8x4xf32, #tpu.memory_space<vmem>>, vector<1x1x8x4xf32>
    %86 = vector.shape_cast %85 : vector<1x1x8x4xf32> to vector<8x4xf32>
    %87 = vector.shape_cast %84 : vector<8x4xf32> to vector<1x1x8x4xf32>
    tpu.vector_store %arg6[%c0_78, %c6_79, %c0_80, %c0_81], %87 {strides = array<i32>} : memref<1x8x8x4xf32, #tpu.memory_space<vmem>>, vector<1x1x8x4xf32>,
    %88 = vector.extract_strided_slice %3 {offsets = [0, 28], sizes = [8, 4], strides = [1, 1]} : vector<8x96xf32> to vector<8x4xf32>
    %c0_82 = arith.constant 0 : index
    %c7 = arith.constant 7 : index
    %c0_83 = arith.constant 0 : index
    %c0_84 = arith.constant 0 : index
    %89 = vector.load %arg4[%c0_82, %c7, %c0_83, %c0_84] : memref<1x8x8x4xf32, #tpu.memory_space<vmem>>, vector<1x1x8x4xf32>
    %90 = vector.shape_cast %89 : vector<1x1x8x4xf32> to vector<8x4xf32>
    %91 = vector.shape_cast %88 : vector<8x4xf32> to vector<1x1x8x4xf32>
    tpu.vector_store %arg4[%c0_82, %c7, %c0_83, %c0_84], %91 {strides = array<i32>} : memref<1x8x8x4xf32, #tpu.memory_space<vmem>>, vector<1x1x8x4xf32>,
    %92 = vector.extract_strided_slice %3 {offsets = [0, 60], sizes = [8, 4], strides = [1, 1]} : vector<8x96xf32> to vector<8x4xf32>
    %c0_85 = arith.constant 0 : index
    %c7_86 = arith.constant 7 : index
    %c0_87 = arith.constant 0 : index
    %c0_88 = arith.constant 0 : index
    %93 = vector.load %arg5[%c0_85, %c7_86, %c0_87, %c0_88] : memref<1x8x8x4xf32, #tpu.memory_space<vmem>>, vector<1x1x8x4xf32>
    %94 = vector.shape_cast %93 : vector<1x1x8x4xf32> to vector<8x4xf32>
    %95 = vector.shape_cast %92 : vector<8x4xf32> to vector<1x1x8x4xf32>
    tpu.vector_store %arg5[%c0_85, %c7_86, %c0_87, %c0_88], %95 {strides = array<i32>} : memref<1x8x8x4xf32, #tpu.memory_space<vmem>>, vector<1x1x8x4xf32>,
    %96 = vector.extract_strided_slice %3 {offsets = [0, 92], sizes = [8, 4], strides = [1, 1]} : vector<8x96xf32> to vector<8x4xf32>
    %c0_89 = arith.constant 0 : index
    %c7_90 = arith.constant 7 : index
    %c0_91 = arith.constant 0 : index
    %c0_92 = arith.constant 0 : index
    %97 = vector.load %arg6[%c0_89, %c7_90, %c0_91, %c0_92] : memref<1x8x8x4xf32, #tpu.memory_space<vmem>>, vector<1x1x8x4xf32>
    %98 = vector.shape_cast %97 : vector<1x1x8x4xf32> to vector<8x4xf32>
    %99 = vector.shape_cast %96 : vector<8x4xf32> to vector<1x1x8x4xf32>
    tpu.vector_store %arg6[%c0_89, %c7_90, %c0_91, %c0_92], %99 {strides = array<i32>} : memref<1x8x8x4xf32, #tpu.memory_space<vmem>>, vector<1x1x8x4xf32>,
    return
  }
  func.func @transform_0(%arg0: i32, %arg1: i32) -> (i32, i32, i32) {
    %c0_i32 = arith.constant 0 : i32
    %c0_i32_0 = arith.constant 0 : i32
    return %arg0, %arg1, %c0_i32 : i32, i32, i32
  }
  func.func @transform_1(%arg0: i32, %arg1: i32) -> (i32, i32) {
    %c0_i32 = arith.constant 0 : i32
    %c0_i32_0 = arith.constant 0 : i32
    %c0_i32_1 = arith.constant 0 : i32
    return %c0_i32, %c0_i32_0 : i32, i32
  }
  func.func @transform_2(%arg0: i32, %arg1: i32) -> (i32, i32, i32, i32) {
    %c0_i32 = arith.constant 0 : i32
    %c0_i32_0 = arith.constant 0 : i32
    %c0_i32_1 = arith.constant 0 : i32
    return %arg0, %c0_i32, %arg1, %c0_i32_0 : i32, i32, i32, i32
  }
  func.func @transform_3(%arg0: i32, %arg1: i32) -> (i32, i32, i32, i32) {
    %c0_i32 = arith.constant 0 : i32
    %c0_i32_0 = arith.constant 0 : i32
    %c0_i32_1 = arith.constant 0 : i32
    return %arg0, %c0_i32, %arg1, %c0_i32_0 : i32, i32, i32, i32
  }
  func.func @transform_4(%arg0: i32, %arg1: i32) -> (i32, i32, i32, i32) {
    %c0_i32 = arith.constant 0 : i32
    %c0_i32_0 = arith.constant 0 : i32
    %c0_i32_1 = arith.constant 0 : i32
    return %arg0, %c0_i32, %arg1, %c0_i32_0 : i32, i32, i32, i32
  }
}

</mosaic_0001>

<llo_original>
// kernel: tpu_custom_call.1
$region0: #{tpu_custom_call.1}
  #allocation0 [shape = 'u32[]', space=smem, size = 0x4, offset = 0x4, fixed_abs, tag = 'smem constant byte address 0x4 - core index']
  #allocation1 [shape = 'u32[144,128]{1,0:T(1,128)}', space=vmem, size = 0x12000, scoped, tag = 'internal scratch']
  %s0 = inlined_call_operand.hbm [shape: f32[2,8,32], index: 0, kind: input, shape index: {}]
  %s1 = inlined_call_operand.hbm [shape: f32[32,96], index: 1, kind: input, shape index: {}]
  %s2 = inlined_call_operand.vmem [shape: f32[2,8,8,4], index: 2, kind: output, shape index: {0}]
  %s3 = inlined_call_operand.vmem [shape: f32[2,8,8,4], index: 3, kind: output, shape index: {1}]
  %s4 = inlined_call_operand.vmem [shape: f32[2,8,8,4], index: 4, kind: output, shape index: {2}]
  %5 = xla_tuple %s2, %s3, %s4
  %s6 = sld [smem:[#allocation0]]
  $region65: #{tpu_custom_call.1} parent=0
    _
  %s8 = ssub.s32 1, %s6
  %s9 = scalar_select 0, %s8, %s6
  $region1: #{tpu_custom_call.1} parent=0
    #allocation2 [shape = 'u8[8192]{0}', space=vmem, size = 0x2000, scoped, tag = 'input window, operand 0']
    #allocation3 [shape = 's32[2]{0}', space=sflag, size = 0x8, scoped, tag = 'scoped memory for tpu_custom_call.1']
    #allocation4 [shape = 'u8[16384]{0}', space=vmem, size = 0x4000, scoped, tag = 'input window, operand 1, single buffered']
    #allocation5 [shape = 's32[1]{0}', space=sflag, size = 0x4, scoped, tag = 'scoped memory for tpu_custom_call.1']
    %10 = vsyncpa [#allocation3], 0
    %s11 = scalar_lea.sflag [#allocation3], 1
    %12 = vsyncpa %s11, 0
    %13 = vsyncpa [#allocation5], 0
    loop: start=0, step=1, limit=4
    $region2: #{tpu_custom_call.1} parent=1 // loop_pre_header
      _
    $region3: #{tpu_custom_call.1} parent=1 // loop_header
      %s15 = sphi 0, %s19
      %p16 = scmp.ge.s32.totalorder %s15, 4
      %s22 = sphi 0, %s34
      %s23 = sphi 0, %s30
      %s24 = sphi 0, %s22
      %s25 = sphi 0, %s23
      %s26 = sphi 0, %s24
      %s27 = sphi 0, %s25
      %s39 = sphi 0, %s41
      %s42 = sphi 0, %s39
      %s43 = sphi 0, %s42
      %s59 = sphi 0, %s43
      %s63 = sphi 0, %s63
      %s65 = sphi 0, %s63
      %s66 = sphi 0, %s65
      %s80 = sphi 0, %s66
      %s88 = sphi 0, %s90
      %s91 = sphi 0, %s88
      %s92 = sphi 0, %s91
      %s108 = sphi 0, %s92
      %s116 = sphi 0, %s118
      %s119 = sphi 0, %s116
      %s120 = sphi 0, %s119
      %s136 = sphi 0, %s120
      %s144 = sphi 0, %s146
      %s147 = sphi 0, %s144
      %s148 = sphi 0, %s147
      %s164 = sphi 0, %s148
    $region4: #{tpu_custom_call.1} parent=1 // loop_header_branch
      %18 = sbr.rel (%p16) target = $region8
    $region5: #{tpu_custom_call.1} parent=1 // loop_body
      %s20 = ssub.s32 %s15, 1
      %s21 = ssub.s32 %s15, 2
      %s28 = sadd.s32 1, %s23
      %p29 = scmp.ge.s32.totalorder %s28, 1
      %s30 = scalar_select %p29, 0, %s28
      %s31 = sadd.s32 1, %s22
      %s32 = scalar_select %p29, %s31, %s22
      %p33 = scmp.ge.s32.totalorder %s32, 2
      %s34 = scalar_select %p33, 0, %s32
      %s35 = ssub.s32 %s22, %s34
      %s36 = ssub.s32 %s23, %s30
      %s37 = sor.u32 %s35, %s36
      %p38 = scmp.eq.s32.totalorder %s37, 0
      %s40 = sadd.s32 %s39, 1
      %s41 = scalar_select %p38, %s39, %s40
      %p44 = pneg %p38
      %p45 = scmp.eq.s32.totalorder %s15, 1
      %p46 = por %p44, %p45
      %p47 = scmp.ne.s32.totalorder %s39, %s42
      %p48 = scmp.eq.s32.totalorder %s15, 0
      %p49 = por %p47, %p48
      %p50 = scmp.ne.s32.totalorder %s39, %s42
      %p51 = scmp.eq.s32.totalorder %s20, 1
      %p52 = por %p50, %p51
      %p53 = scmp.ne.s32.totalorder %s42, %s43
      %p54 = scmp.eq.s32.totalorder %s20, 0
      %p55 = por %p53, %p54
      %p56 = scmp.ne.s32.totalorder %s42, %s43
      %p57 = scmp.eq.s32.totalorder %s21, 1
      %p58 = por %p56, %p57
      %p60 = scmp.ne.s32.totalorder %s43, %s59
      %p61 = scmp.eq.s32.totalorder %s21, 0
      %p62 = por %p60, %p61
      %s64 = sadd.s32 %s63, 1
      %p67 = scmp.eq.s32.totalorder %s15, 1
      %p68 = scmp.ne.s32.totalorder %s63, %s65
      %p69 = scmp.eq.s32.totalorder %s15, 0
      %p70 = por %p68, %p69
      %p71 = scmp.ne.s32.totalorder %s63, %s65
      %p72 = scmp.eq.s32.totalorder %s20, 1
      %p73 = por %p71, %p72
      %p74 = scmp.ne.s32.totalorder %s65, %s66
      %p75 = scmp.eq.s32.totalorder %s20, 0
      %p76 = por %p74, %p75
      %p77 = scmp.ne.s32.totalorder %s65, %s66
      %p78 = scmp.eq.s32.totalorder %s21, 1
      %p79 = por %p77, %p78
      %p81 = scmp.ne.s32.totalorder %s66, %s80
      %p82 = scmp.eq.s32.totalorder %s21, 0
      %p83 = por %p81, %p82
      %s84 = ssub.s32 %s22, %s34
      %s85 = ssub.s32 %s23, %s30
      %s86 = sor.u32 %s84, %s85
      %p87 = scmp.eq.s32.totalorder %s86, 0
      %s89 = sadd.s32 %s88, 1
      %s90 = scalar_select %p87, %s88, %s89
      %p93 = pneg %p87
      %p94 = scmp.eq.s32.totalorder %s15, 1
      %p95 = por %p93, %p94
      %p96 = scmp.ne.s32.totalorder %s88, %s91
      %p97 = scmp.eq.s32.totalorder %s15, 0
      %p98 = por %p96, %p97
      %p99 = scmp.ne.s32.totalorder %s88, %s91
      %p100 = scmp.eq.s32.totalorder %s20, 1
      %p101 = por %p99, %p100
      %p102 = scmp.ne.s32.totalorder %s91, %s92
      %p103 = scmp.eq.s32.totalorder %s20, 0
      %p104 = por %p102, %p103
      %p105 = scmp.ne.s32.totalorder %s91, %s92
      %p106 = scmp.eq.s32.totalorder %s21, 1
      %p107 = por %p105, %p106
      %p109 = scmp.ne.s32.totalorder %s92, %s108
      %p110 = scmp.eq.s32.totalorder %s21, 0
      %p111 = por %p109, %p110
      %s112 = ssub.s32 %s22, %s34
      %s113 = ssub.s32 %s23, %s30
      %s114 = sor.u32 %s112, %s113
      %p115 = scmp.eq.s32.totalorder %s114, 0
      %s117 = sadd.s32 %s116, 1
      %s118 = scalar_select %p115, %s116, %s117
      %p121 = pneg %p115
      %p122 = scmp.eq.s32.totalorder %s15, 1
      %p123 = por %p121, %p122
      %p124 = scmp.ne.s32.totalorder %s116, %s119
      %p125 = scmp.eq.s32.totalorder %s15, 0
      %p126 = por %p124, %p125
      %p127 = scmp.ne.s32.totalorder %s116, %s119
      %p128 = scmp.eq.s32.totalorder %s20, 1
      %p129 = por %p127, %p128
      %p130 = scmp.ne.s32.totalorder %s119, %s120
      %p131 = scmp.eq.s32.totalorder %s20, 0
      %p132 = por %p130, %p131
      %p133 = scmp.ne.s32.totalorder %s119, %s120
      %p134 = scmp.eq.s32.totalorder %s21, 1
      %p135 = por %p133, %p134
      %p137 = scmp.ne.s32.totalorder %s120, %s136
      %p138 = scmp.eq.s32.totalorder %s21, 0
      %p139 = por %p137, %p138
      %s140 = ssub.s32 %s22, %s34
      %s141 = ssub.s32 %s23, %s30
      %s142 = sor.u32 %s140, %s141
      %p143 = scmp.eq.s32.totalorder %s142, 0
      %s145 = sadd.s32 %s144, 1
      %s146 = scalar_select %p143, %s144, %s145
      %p149 = pneg %p143
      %p150 = scmp.eq.s32.totalorder %s15, 1
      %p151 = por %p149, %p150
      %p152 = scmp.ne.s32.totalorder %s144, %s147
      %p153 = scmp.eq.s32.totalorder %s15, 0
      %p154 = por %p152, %p153
      %p155 = scmp.ne.s32.totalorder %s144, %s147
      %p156 = scmp.eq.s32.totalorder %s20, 1
      %p157 = por %p155, %p156
      %p158 = scmp.ne.s32.totalorder %s147, %s148
      %p159 = scmp.eq.s32.totalorder %s20, 0
      %p160 = por %p158, %p159
      %p161 = scmp.ne.s32.totalorder %s147, %s148
      %p162 = scmp.eq.s32.totalorder %s21, 1
      %p163 = por %p161, %p162
      %p165 = scmp.ne.s32.totalorder %s148, %s164
      %p166 = scmp.eq.s32.totalorder %s21, 0
      %p167 = por %p165, %p166
      %p168 = scmp.le.s32.totalorder 1, %s15
      %p169 = scmp.lt.s32.totalorder %s15, 3
      %p170 = pnand %p168, %p169
      %p171 = pneg %p170
      // Predicated region
      $region9: #{tpu_custom_call.1} parent=5 // pred_check
        _
      $region10: #{tpu_custom_call.1} parent=5 // pred_check_branch
        %173 = sbr.rel (%p170) target = $region12
      $region11: #{tpu_custom_call.1} parent=5 // pred_region
        %s174 = ssub.s32 %s15, 1
        // Predicated region
        $region13: #{tpu_custom_call.1} parent=11 // pred_check
          %p175 = pneg %p76
        $region14: #{tpu_custom_call.1} parent=11 // pred_check_branch
          %177 = sbr.rel (%p175) target = $region16
        $region15: #{tpu_custom_call.1} parent=11 // pred_region
          %s179 = ssub.s32 512, 512
          %180 = vsyncadd [#allocation5], %s179
          %s181 = sshll.u32 [#allocation4], 4
          %s182 = int_to_ptr.vmem [resolvable:$true] %s181
          %187 = dma.hbm_to_vmem [thread:$0]  %s1, 512, %s182, [#allocation5], 128, 128, 8
        $region16: #{tpu_custom_call.1} parent=11 // pred_fallthru
          _
      $region12: #{tpu_custom_call.1} parent=5 // pred_fallthru
        _
      %p188 = scmp.lt.s32.totalorder %s15, 2
      // Predicated region
      $region17: #{tpu_custom_call.1} parent=5 // pred_check
        %p189 = pneg %p188
      $region18: #{tpu_custom_call.1} parent=5 // pred_check_branch
        %191 = sbr.rel (%p189) target = $region20
      $region19: #{tpu_custom_call.1} parent=5 // pred_region
        // Predicated region
        $region21: #{tpu_custom_call.1} parent=19 // pred_check
          %p192 = pneg %p49
        $region22: #{tpu_custom_call.1} parent=19 // pred_check_branch
          %194 = sbr.rel (%p192) target = $region24
        $region23: #{tpu_custom_call.1} parent=19 // pred_region
          %s195 = sand.u32 %s39, 1
          %s196 = scalar_lea.sflag [#allocation3], %s195
          %s197 = sand.u32 %s39, 1
          %s198 = smul.addr %s197, 8
          %s199 = scalar_lea.vmem [#allocation2], %s198
          %s201 = ssub.s32 128, 128
          %202 = vsyncadd %s196, %s201
          %s203 = sadd.s32 %s23, %s22
          %s204 = smul.addr %s203, 128
          %s205 = scalar_lea.hbm %s0, %s204
          %s207 = sshll.u32 %s199, 4
          %s208 = int_to_ptr.vmem [resolvable:$true] %s207
          %210 = dma.hbm_to_vmem [thread:$0]  %s205, 128, %s208, %s196
        $region24: #{tpu_custom_call.1} parent=19 // pred_fallthru
          _
      $region20: #{tpu_custom_call.1} parent=5 // pred_fallthru
        _
      %p211 = scmp.le.s32.totalorder 1, %s15
      %p212 = scmp.lt.s32.totalorder %s15, 3
      %p213 = pnand %p211, %p212
      %p214 = pneg %p213
      // Predicated region
      $region25: #{tpu_custom_call.1} parent=5 // pred_check
        _
      $region26: #{tpu_custom_call.1} parent=5 // pred_check_branch
        %216 = sbr.rel (%p213) target = $region28
      $region27: #{tpu_custom_call.1} parent=5 // pred_region
        %s217 = ssub.s32 %s15, 1
        %s218 = sand.u32 %s42, 1
        %s219 = scalar_lea.sflag [#allocation3], %s218
        %s220 = sand.u32 %s42, 1
        %s221 = smul.addr %s220, 8
        %s222 = scalar_lea.vmem [#allocation2], %s221
        // Predicated region
        $region29: #{tpu_custom_call.1} parent=27 // pred_check
          %p223 = pneg %p55
        $region30: #{tpu_custom_call.1} parent=27 // pred_check_branch
          %225 = sbr.rel (%p223) target = $region32
        $region31: #{tpu_custom_call.1} parent=27 // pred_region
          %226 = dma.done %s219, 128
        $region32: #{tpu_custom_call.1} parent=27 // pred_fallthru
          _
        // Predicated region
        $region33: #{tpu_custom_call.1} parent=27 // pred_check
          %p227 = pneg %p76
        $region34: #{tpu_custom_call.1} parent=27 // pred_check_branch
          %229 = sbr.rel (%p227) target = $region36
        $region35: #{tpu_custom_call.1} parent=27 // pred_region
          %230 = dma.done [#allocation5], 512
        $region36: #{tpu_custom_call.1} parent=27 // pred_fallthru
          _
        %s231 = sand.u32 %s42, 1
        %s232 = scalar_lea.sflag [#allocation3], %s231
        %s233 = sand.u32 %s42, 1
        %s234 = smul.addr %s233, 8
        %s235 = scalar_lea.vmem [#allocation2], %s234
        %p236 = pneg %p55
        %p237 = pneg %p52
        %p238 = pneg %p76
        %p239 = pneg %p73
        %p240 = pneg %p104
        %p241 = pneg %p101
        %p242 = scmp.lt.s32.totalorder %s24, 1
        %s243 = scalar_select %p242, %s24, 1
        %p244 = scmp.lt.s32.totalorder %s25, 0
        %s245 = scalar_select %p244, %s25, 0
        %s246 = smul.addr %s243, 8
        %s247 = sadd.s32 %s245, %s246
        %s248 = smul.addr %s247, 8
        %s249 = scalar_lea.vmem %s2, %s248
        %p250 = pneg %p132
        %p251 = pneg %p129
        %p252 = scmp.lt.s32.totalorder %s24, 1
        %s253 = scalar_select %p252, %s24, 1
        %p254 = scmp.lt.s32.totalorder %s25, 0
        %s255 = scalar_select %p254, %s25, 0
        %s256 = smul.addr %s253, 8
        %s257 = sadd.s32 %s255, %s256
        %s258 = smul.addr %s257, 8
        %s259 = scalar_lea.vmem %s3, %s258
        %p260 = pneg %p160
        %p261 = pneg %p157
        %p262 = scmp.lt.s32.totalorder %s24, 1
        %s263 = scalar_select %p262, %s24, 1
        %p264 = scmp.lt.s32.totalorder %s25, 0
        %s265 = scalar_select %p264, %s25, 0
        %s266 = smul.addr %s263, 8
        %s267 = sadd.s32 %s265, %s266
        %s268 = smul.addr %s267, 8
        %s269 = scalar_lea.vmem %s4, %s268
        %p270 = scmp.lt.s32.totalorder %s24, 1
        %s271 = scalar_select %p270, %s24, 1
        %p272 = scmp.lt.s32.totalorder %s25, 0
        %s273 = scalar_select %p272, %s25, 0
        %s274 = smul.addr %s271, 8
        %s275 = sadd.s32 %s273, %s274
        %s276 = smul.addr %s275, 8
        %s277 = scalar_lea.vmem %s2, %s276
        %p278 = scmp.lt.s32.totalorder %s24, 1
        %s279 = scalar_select %p278, %s24, 1
        %p280 = scmp.lt.s32.totalorder %s25, 0
        %s281 = scalar_select %p280, %s25, 0
        %s282 = smul.addr %s279, 8
        %s283 = sadd.s32 %s281, %s282
        %s284 = smul.addr %s283, 8
        %s285 = scalar_lea.vmem %s3, %s284
        %p286 = scmp.lt.s32.totalorder %s24, 1
        %s287 = scalar_select %p286, %s24, 1
        %p288 = scmp.lt.s32.totalorder %s25, 0
        %s289 = scalar_select %p288, %s25, 0
        %s290 = smul.addr %s287, 8
        %s291 = sadd.s32 %s289, %s290
        %s292 = smul.addr %s291, 8
        %s293 = scalar_lea.vmem %s4, %s292
        %v294 = vld [vmem:[%s222] sm:$0xff]
        %v295 = vld [vmem:[#allocation4] sm:$0xff]
        %v296 = vld [vmem:[#allocation4 + $0x8] sm:$0xff]
        %v297 = vld [vmem:[#allocation4 + $0x10] sm:$0xff]
        %v298 = vld [vmem:[#allocation4 + $0x18] sm:$0xff]
        %vm299 = vcmask 261120
        %v301 = vsel %vm299, %v294, 0
        %303 = vmatprep.subr.mxu0 0.0
        %304 = vmatpush1.msra.mxu0 0.0
        %305 = vmatprep.subr.mxu0 0.0
        %306 = vmatpush1.msra.mxu0 0.0
        %307 = vmatprep.subr.mxu0 0.0
        %308 = vmatpush1.msra.mxu0 0.0
        %309 = vmatprep.subr.mxu0 0.0
        %310 = vmatpush1.msra.mxu0 0.0
        %311 = vmatprep.subr.mxu0 0.0
        %312 = vmatpush1.msra.mxu0 0.0
        %313 = vmatprep.subr.mxu0 0.0
        %314 = vmatpush1.msra.mxu0 0.0
        %315 = vmatprep.subr.mxu0 0.0
        %316 = vmatpush1.msra.mxu0 0.0
        %317 = vmatprep.subr.mxu0 0.0
        %318 = vmatpush1.msra.mxu0 0.0
        %319 = vmatprep.subr.mxu0 0.0
        %320 = vmatpush1.msra.mxu0 0.0
        %321 = vmatprep.subr.mxu0 0.0
        %322 = vmatpush1.msra.mxu0 0.0
        %323 = vmatprep.subr.mxu0 0.0
        %324 = vmatpush1.msra.mxu0 0.0
        %325 = vmatprep.subr.mxu0 0.0
        %326 = vmatpush1.msra.mxu0 0.0
        %327 = vmatprep.subr.mxu0 0.0
        %328 = vmatpush1.msra.mxu0 %v298
        %329 = vmatprep.subr.mxu0 0.0
        %330 = vmatpush1.msra.mxu0 %v297
        %331 = vmatprep.subr.mxu0 0.0
        %332 = vmatpush1.msra.mxu0 %v296
        %333 = vmatprep.subr.mxu0 0.0
        %334 = vmatpush1.msra.mxu0 %v295
        %335 = vmatprep.subr.mxu0 0.0
        %336 = vmatpush2.msra.mxu0 0.0
        %337 = vmatprep.subr.mxu0 0.0
        %338 = vmatpush2.msra.mxu0 0.0
        %339 = vmatprep.subr.mxu0 0.0
        %340 = vmatpush2.msra.mxu0 0.0
        %341 = vmatprep.subr.mxu0 0.0
        %342 = vmatpush2.msra.mxu0 0.0
        %343 = vmatprep.subr.mxu0 0.0
        %344 = vmatpush2.msra.mxu0 0.0
        %345 = vmatprep.subr.mxu0 0.0
        %346 = vmatpush2.msra.mxu0 0.0
        %347 = vmatprep.subr.mxu0 0.0
        %348 = vmatpush2.msra.mxu0 0.0
        %349 = vmatprep.subr.mxu0 0.0
        %350 = vmatpush2.msra.mxu0 0.0
        %351 = vmatprep.subr.mxu0 0.0
        %352 = vmatpush2.msra.mxu0 0.0
        %353 = vmatprep.subr.mxu0 0.0
        %354 = vmatpush2.msra.mxu0 0.0
        %355 = vmatprep.subr.mxu0 0.0
        %356 = vmatpush2.msra.mxu0 0.0
        %357 = vmatprep.subr.mxu0 0.0
        %358 = vmatpush2.msra.mxu0 0.0
        %359 = vmatprep.subr.mxu0 0.0
        %360 = vmatpush2.msra.mxu0 0.0
        %361 = vmatprep.subr.mxu0 0.0
        %362 = vmatpush2.msra.mxu0 0.0
        %363 = vmatprep.subr.mxu0 0.0
        %364 = vmatpush2.msra.mxu0 0.0
        %365 = vmatprep.subr.mxu0 0.0
        %366 = vmatpush2.msra.mxu0 0.0
        %367 = vmatprep.mubr.f32.mxu0 0.0
        %368 = vmatmul.mubr.f32.gmra.mxu0 %v301
        %v369 = vpop.f32.mrf.mxu0
        %v370 = vadd.f32 0.0, %v369
        %v371 = vpop.f32.mrf.mxu0
        %372 = vdwg.mxu0
        %vm373 = vcmask 31744
        %374 = vst.msk [vmem:[%s277] sm:$0xff] %vm373, %v370
        %376 = vrot.lane.b32.xlu0 %v370, 96
        %v377 = vpop.permute.xlu0 %376
        %379 = vst.msk [vmem:[%s285] sm:$0xff] %vm373, %v377
        %380 = vrot.lane.b32.xlu0 %v370, 64
        %v381 = vpop.permute.xlu0 %380
        %383 = vst.msk [vmem:[%s293] sm:$0xff] %vm373, %v381
        %384 = vrot.lane.b32.xlu0 %v370, 124
        %v385 = vpop.permute.xlu0 %384
        %s387 = scalar_lea.vmem %s277, 8
        %388 = vst.msk [vmem:[%s387] sm:$0xff] %vm373, %v385
        %389 = vrot.lane.b32.xlu0 %v370, 92
        %v390 = vpop.permute.xlu0 %389
        %s392 = scalar_lea.vmem %s285, 8
        %393 = vst.msk [vmem:[%s392] sm:$0xff] %vm373, %v390
        %394 = vrot.lane.b32.xlu0 %v370, 60
        %v395 = vpop.permute.xlu0 %394
        %s397 = scalar_lea.vmem %s293, 8
        %398 = vst.msk [vmem:[%s397] sm:$0xff] %vm373, %v395
        %399 = vrot.lane.b32.xlu0 %v370, 120
        %v400 = vpop.permute.xlu0 %399
        %s402 = scalar_lea.vmem %s277, 16
        %403 = vst.msk [vmem:[%s402] sm:$0xff] %vm373, %v400
        %404 = vrot.lane.b32.xlu0 %v370, 88
        %v405 = vpop.permute.xlu0 %404
        %s407 = scalar_lea.vmem %s285, 16
        %408 = vst.msk [vmem:[%s407] sm:$0xff] %vm373, %v405
        %409 = vrot.lane.b32.xlu0 %v370, 56
        %v410 = vpop.permute.xlu0 %409
        %s412 = scalar_lea.vmem %s293, 16
        %413 = vst.msk [vmem:[%s412] sm:$0xff] %vm373, %v410
        %414 = vrot.lane.b32.xlu0 %v370, 116
        %v415 = vpop.permute.xlu0 %414
        %s417 = scalar_lea.vmem %s277, 24
        %418 = vst.msk [vmem:[%s417] sm:$0xff] %vm373, %v415
        %419 = vrot.lane.b32.xlu0 %v370, 84
        %v420 = vpop.permute.xlu0 %419
        %s422 = scalar_lea.vmem %s285, 24
        %423 = vst.msk [vmem:[%s422] sm:$0xff] %vm373, %v420
        %424 = vrot.lane.b32.xlu0 %v370, 52
        %v425 = vpop.permute.xlu0 %424
        %s427 = scalar_lea.vmem %s293, 24
        %428 = vst.msk [vmem:[%s427] sm:$0xff] %vm373, %v425
        %429 = vrot.lane.b32.xlu0 %v370, 112
        %v430 = vpop.permute.xlu0 %429
        %s432 = scalar_lea.vmem %s277, 32
        %433 = vst.msk [vmem:[%s432] sm:$0xff] %vm373, %v430
        %434 = vrot.lane.b32.xlu0 %v370, 80
        %v435 = vpop.permute.xlu0 %434
        %s437 = scalar_lea.vmem %s285, 32
        %438 = vst.msk [vmem:[%s437] sm:$0xff] %vm373, %v435
        %439 = vrot.lane.b32.xlu0 %v370, 48
        %v440 = vpop.permute.xlu0 %439
        %s442 = scalar_lea.vmem %s293, 32
        %443 = vst.msk [vmem:[%s442] sm:$0xff] %vm373, %v440
        %444 = vrot.lane.b32.xlu0 %v370, 108
        %v445 = vpop.permute.xlu0 %444
        %s447 = scalar_lea.vmem %s277, 40
        %448 = vst.msk [vmem:[%s447] sm:$0xff] %vm373, %v445
        %449 = vrot.lane.b32.xlu0 %v370, 76
        %v450 = vpop.permute.xlu0 %449
        %s452 = scalar_lea.vmem %s285, 40
        %453 = vst.msk [vmem:[%s452] sm:$0xff] %vm373, %v450
        %454 = vrot.lane.b32.xlu0 %v370, 44
        %v455 = vpop.permute.xlu0 %454
        %s457 = scalar_lea.vmem %s293, 40
        %458 = vst.msk [vmem:[%s457] sm:$0xff] %vm373, %v455
        %459 = vrot.lane.b32.xlu0 %v370, 104
        %v460 = vpop.permute.xlu0 %459
        %s462 = scalar_lea.vmem %s277, 48
        %463 = vst.msk [vmem:[%s462] sm:$0xff] %vm373, %v460
        %464 = vrot.lane.b32.xlu0 %v370, 72
        %v465 = vpop.permute.xlu0 %464
        %s467 = scalar_lea.vmem %s285, 48
        %468 = vst.msk [vmem:[%s467] sm:$0xff] %vm373, %v465
        %469 = vrot.lane.b32.xlu0 %v370, 40
        %v470 = vpop.permute.xlu0 %469
        %s472 = scalar_lea.vmem %s293, 48
        %473 = vst.msk [vmem:[%s472] sm:$0xff] %vm373, %v470
        %474 = vrot.lane.b32.xlu0 %v370, 100
        %v475 = vpop.permute.xlu0 %474
        %s477 = scalar_lea.vmem %s277, 56
        %478 = vst.msk [vmem:[%s477] sm:$0xff] %vm373, %v475
        %479 = vrot.lane.b32.xlu0 %v370, 68
        %v480 = vpop.permute.xlu0 %479
        %s482 = scalar_lea.vmem %s285, 56
        %483 = vst.msk [vmem:[%s482] sm:$0xff] %vm373, %v480
        %484 = vrot.lane.b32.xlu0 %v370, 36
        %v485 = vpop.permute.xlu0 %484
        %s487 = scalar_lea.vmem %s293, 56
        %488 = vst.msk [vmem:[%s487] sm:$0xff] %vm373, %v485
        %p489 = scmp.lt.s32.totalorder %s24, 1
        %s490 = scalar_select %p489, %s24, 1
        %p491 = scmp.lt.s32.totalorder %s25, 0
        %s492 = scalar_select %p491, %s25, 0
        %s493 = smul.addr %s490, 8
        %s494 = sadd.s32 %s492, %s493
        %s495 = smul.addr %s494, 8
        %s496 = scalar_lea.vmem %s2, %s495
        %p497 = scmp.lt.s32.totalorder %s24, 1
        %s498 = scalar_select %p497, %s24, 1
        %p499 = scmp.lt.s32.totalorder %s25, 0
        %s500 = scalar_select %p499, %s25, 0
        %s501 = smul.addr %s498, 8
        %s502 = sadd.s32 %s500, %s501
        %s503 = smul.addr %s502, 8
        %s504 = scalar_lea.vmem %s3, %s503
        %p505 = scmp.lt.s32.totalorder %s24, 1
        %s506 = scalar_select %p505, %s24, 1
        %p507 = scmp.lt.s32.totalorder %s25, 0
        %s508 = scalar_select %p507, %s25, 0
        %s509 = smul.addr %s506, 8
        %s510 = sadd.s32 %s508, %s509
        %s511 = smul.addr %s510, 8
        %s512 = scalar_lea.vmem %s4, %s511
        // Predicated region
        $region37: #{tpu_custom_call.1} parent=27 // pred_check
          %p513 = pneg %p101
        $region38: #{tpu_custom_call.1} parent=27 // pred_check_branch
          %515 = sbr.rel (%p513) target = $region40
        $region39: #{tpu_custom_call.1} parent=27 // pred_region
          _
        $region40: #{tpu_custom_call.1} parent=27 // pred_fallthru
          _
        // Predicated region
        $region41: #{tpu_custom_call.1} parent=27 // pred_check
          %p516 = pneg %p129
        $region42: #{tpu_custom_call.1} parent=27 // pred_check_branch
          %518 = sbr.rel (%p516) target = $region44
        $region43: #{tpu_custom_call.1} parent=27 // pred_region
          _
        $region44: #{tpu_custom_call.1} parent=27 // pred_fallthru
          _
        // Predicated region
        $region45: #{tpu_custom_call.1} parent=27 // pred_check
          %p519 = pneg %p157
        $region46: #{tpu_custom_call.1} parent=27 // pred_check_branch
          %521 = sbr.rel (%p519) target = $region48
        $region47: #{tpu_custom_call.1} parent=27 // pred_region
          _
        $region48: #{tpu_custom_call.1} parent=27 // pred_fallthru
          _
      $region28: #{tpu_custom_call.1} parent=5 // pred_fallthru
        _
      %p522 = scmp.le.s32.totalorder 2, %s15
      // Predicated region
      $region49: #{tpu_custom_call.1} parent=5 // pred_check
        %p523 = pneg %p522
      $region50: #{tpu_custom_call.1} parent=5 // pred_check_branch
        %525 = sbr.rel (%p523) target = $region52
      $region51: #{tpu_custom_call.1} parent=5 // pred_region
        %s526 = ssub.s32 %s15, 2
        // Predicated region
        $region53: #{tpu_custom_call.1} parent=51 // pred_check
          %p527 = pneg %p107
        $region54: #{tpu_custom_call.1} parent=51 // pred_check_branch
          %529 = sbr.rel (%p527) target = $region56
        $region55: #{tpu_custom_call.1} parent=51 // pred_region
          %p530 = scmp.lt.s32.totalorder %s26, 1
          %s531 = scalar_select %p530, %s26, 1
          %p532 = scmp.lt.s32.totalorder %s27, 0
          %s533 = scalar_select %p532, %s27, 0
          %s534 = smul.addr %s531, 8
          %s535 = sadd.s32 %s533, %s534
          %s536 = smul.addr %s535, 8
          %s537 = scalar_lea.vmem %s2, %s536
        $region56: #{tpu_custom_call.1} parent=51 // pred_fallthru
          _
        // Predicated region
        $region57: #{tpu_custom_call.1} parent=51 // pred_check
          %p538 = pneg %p135
        $region58: #{tpu_custom_call.1} parent=51 // pred_check_branch
          %540 = sbr.rel (%p538) target = $region60
        $region59: #{tpu_custom_call.1} parent=51 // pred_region
          %p541 = scmp.lt.s32.totalorder %s26, 1
          %s542 = scalar_select %p541, %s26, 1
          %p543 = scmp.lt.s32.totalorder %s27, 0
          %s544 = scalar_select %p543, %s27, 0
          %s545 = smul.addr %s542, 8
          %s546 = sadd.s32 %s544, %s545
          %s547 = smul.addr %s546, 8
          %s548 = scalar_lea.vmem %s3, %s547
        $region60: #{tpu_custom_call.1} parent=51 // pred_fallthru
          _
        // Predicated region
        $region61: #{tpu_custom_call.1} parent=51 // pred_check
          %p549 = pneg %p163
        $region62: #{tpu_custom_call.1} parent=51 // pred_check_branch
          %551 = sbr.rel (%p549) target = $region64
        $region63: #{tpu_custom_call.1} parent=51 // pred_region
          %p552 = scmp.lt.s32.totalorder %s26, 1
          %s553 = scalar_select %p552, %s26, 1
          %p554 = scmp.lt.s32.totalorder %s27, 0
          %s555 = scalar_select %p554, %s27, 0
          %s556 = smul.addr %s553, 8
          %s557 = sadd.s32 %s555, %s556
          %s558 = smul.addr %s557, 8
          %s559 = scalar_lea.vmem %s4, %s558
        $region64: #{tpu_custom_call.1} parent=51 // pred_fallthru
          _
      $region52: #{tpu_custom_call.1} parent=5 // pred_fallthru
        _
    $region6: #{tpu_custom_call.1} parent=1 // loop_footer
      %s19 = sadd.s32 1, %s15
    $region7: #{tpu_custom_call.1} parent=1 // loop_footer_branch
      %14 = sbr.rel target = $region3
    $region8: #{tpu_custom_call.1} parent=1 // loop_exit
      _
    %560 = vsyncpa [#allocation3], 1
    %s561 = scalar_lea.sflag [#allocation3], 1
    %562 = vsyncpa %s561, 1
    %563 = vsyncpa [#allocation5], 1

</llo_original>
